<compile_context>
chip_gen: v7x
topology: tpu7x:2x2x1
jax: 0.10.0
libtpu: 0.0.40
codegen_flags: <defaults>
</compile_context>

<pallas_src>
import jax
import jax.numpy as jnp
from jax.experimental import pallas as pl
from jax.experimental.pallas import tpu as pltpu


def attentive_pooling_kernel(x_ref, mask_ref, wa_t_ref, ba_ref, w_ref, b_ref,
                             utter_ref, attw_ref):
    x = x_ref[...]                                  # (TB, T, H) f32
    TB, T, H = x.shape

    # hidden = ReLU(x @ W_a^T + b_a).  wa_t_ref already holds W_a.weight.T in
    # bf16, so the MXU consumes native bf16 operands with no in-kernel
    # transpose; accumulate in f32, bias/ReLU in f32.
    x2 = x.reshape(TB * T, H).astype(jnp.bfloat16)  # layout-preserving (T % 8 == 0)
    h = jnp.dot(x2, wa_t_ref[...], preferred_element_type=jnp.float32)
    h = jnp.maximum(h + ba_ref[...], 0.0)           # (TB*T, H) f32, bias (1,H) bcast

    # logits = h @ W.T + b with output width 1 -> VPU multiply + lane reduce
    # (keeps the MXU free, avoids a (1,H) transpose and a 1-lane matmul).
    h3 = h.reshape(TB, T, H)
    b_scalar = b_ref[0, 0]                          # scalar read from SMEM
    logits = jnp.sum(h3 * w_ref[...], axis=-1) + b_scalar        # (TB, T) f32
    logits = logits + mask_ref[...]                 # additive mask, f32

    # Numerically stable masked softmax over T.  Exact reciprocal (EUP slot);
    # approx=True left a row-uniform ~2^-8 error that broke the pooled sum.
    m = jnp.max(logits, axis=-1, keepdims=True)
    e = jnp.exp(logits - m)
    denom = jnp.sum(e, axis=-1, keepdims=True)
    att = e * pl.reciprocal(denom, approx=False)    # (TB, T)

    attw_ref[...] = att                                          # lane-dense (TB, T)
    utter_ref[...] = jnp.sum(x * att[..., None], axis=1)         # (TB, H)


def _tpu_vmem_bytes():
    """Physical VMEM per TensorCore; conservative fallback if not queryable."""
    try:
        info = pltpu.get_tpu_info()
        v = getattr(info, "vmem_capacity_bytes", None)
        if v:
            return int(v)
    except Exception:
        pass
    return 64 << 20        # v7x per-TC; safe lower bound for v5e/v6e too


def _pick_batch_tile(B, T, H, *, budget_bytes, min_grid_steps=1):
    """Largest batch tile that (a) divides B, (b) fits the per-step pipelined
    footprint in `budget_bytes` (including the double-buffered resident
    weights), preferring sublane-aligned (multiple-of-8) tiles.  Set
    min_grid_steps>=4 on v7x so the 'parallel' batch axis can feed both TCs."""
    # Resident, double-buffered weights: bf16 W_a^T + f32 b_a, W.
    fixed = 2 * (H * H * 2) + 2 * 2 * (H * 4)
    # Per batch row: 2x-buffered f32 x, mask, both outputs, plus in-kernel
    # temporaries (bf16 x copy + f32 hidden).
    per_b = 4 * (2 * T * H + 2 * T + 2 * H + 2 * T) + 2 * T * H + 4 * T * H
    cap = max(1, (budget_bytes - fixed) // max(per_b, 1))
    cap = min(cap, B)
    if min_grid_steps > 1:
        cap = min(cap, max(1, B // min_grid_steps))
    if cap >= B:
        return B
    for tb in range(cap, 0, -1):        # prefer sublane-aligned block rows
        if B % tb == 0 and tb % 8 == 0:
            return tb
    for tb in range(cap, 0, -1):
        if B % tb == 0:
            return tb
    return 1


def attentive_pooling(batch_rep, att_mask, wa, ba, w, b, *, batch_tile=None):
    B, T, H = batch_rep.shape

    # Pad T to a multiple of 8 so the in-kernel reshapes are layout-preserving;
    # padded positions are fully masked (-1e9) so they get ~0 attention.
    Tp = ((T + 7) // 8) * 8
    if Tp != T:
        batch_rep = jnp.pad(batch_rep, ((0, 0), (0, Tp - T), (0, 0)))
        att_mask = jnp.pad(att_mask, ((0, 0), (0, Tp - T)), constant_values=-1e9)

    phys_vmem = _tpu_vmem_bytes()
    tile_budget = min(phys_vmem // 2, 48 << 20)      # 48 MiB v5e/v6e, 32 MiB v7x
    vmem_limit = int(min(phys_vmem * 3 // 4, 96 << 20))

    tb = (batch_tile if batch_tile is not None
          else _pick_batch_tile(B, Tp, H, budget_bytes=tile_budget))
    assert B % tb == 0, "batch tile must divide B"
    grid = (B // tb,)

    # One-time layout + dtype op in XLA: MXU-native bf16 RHS, half the resident
    # VMEM footprint, no per-step transpose.
    wa_t = wa.T.astype(jnp.bfloat16)                 # (H_in, H_out)

    cost = pl.CostEstimate(
        flops=int(2 * B * Tp * H * H + 4 * B * Tp * H),
        transcendentals=int(B * Tp),
        bytes_accessed=int(B * Tp * H * 4 + B * Tp * 4 + H * H * 2
                           + 2 * H * 4 + B * H * 4 + B * Tp * 4))

    utter, att = pl.pallas_call(
        attentive_pooling_kernel,
        out_shape=(
            jax.ShapeDtypeStruct((B, H), jnp.float32),    # utter_rep
            jax.ShapeDtypeStruct((B, Tp), jnp.float32),   # att_w (lane-dense)
        ),
        grid=grid,
        in_specs=[
            pl.BlockSpec((tb, Tp, H), lambda i: (i, 0, 0)),     # batch-tiled x
            pl.BlockSpec((tb, Tp), lambda i: (i, 0)),           # batch-tiled mask
            pl.BlockSpec((H, H), lambda i: (0, 0)),             # W_a^T (bf16, resident)
            pl.BlockSpec((1, H), lambda i: (0, 0)),             # b_a   (resident)
            pl.BlockSpec((1, H), lambda i: (0, 0)),             # W     (resident)
            pl.BlockSpec(memory_space=pltpu.MemorySpace.SMEM),  # scalar b in SMEM
        ],
        out_specs=(
            pl.BlockSpec((tb, H), lambda i: (i, 0)),
            pl.BlockSpec((tb, Tp), lambda i: (i, 0)),
        ),
        compiler_params=pltpu.CompilerParams(
            dimension_semantics=("parallel",),
            vmem_limit_bytes=vmem_limit),
        cost_estimate=cost,
    )(batch_rep, att_mask, wa_t, ba, w, b)

    # Strip T padding; trailing unsqueeze in the wrapper keeps the kernel's
    # att_w store lane-dense.
    att = att[:, :T]
    return utter, att[..., None]


def reference(batch_rep, att_mask, wa, ba, w, b):
    h = jax.nn.relu(batch_rep @ wa.T + ba[0])
    logits = (h @ w.T + b[0]).squeeze(-1)
    logits = att_mask + logits
    att_w = jax.nn.softmax(logits, axis=-1)[..., None]
    utter = jnp.sum(batch_rep * att_w, axis=1)
    return utter, att_w


if __name__ == "__main__":
    B, T, H = 16, 8, 32
    key = jax.random.PRNGKey(0)
    k1, k2, k3, k4, k5 = jax.random.split(key, 5)

    batch_rep = jax.random.normal(k1, (B, T, H), dtype=jnp.float32)
    # Padding mask: 0 for valid positions, large negative for padded ones.
    lengths = (T - (jnp.arange(B) % 3)).astype(jnp.int32)
    att_mask = jnp.where(jnp.arange(T)[None, :] < lengths[:, None],
                         0.0, -1e9).astype(jnp.float32)

    # Parameters: shapes from nn.Linear(H, H) and nn.Linear(H, 1).
    wa = jax.random.normal(k2, (H, H), dtype=jnp.float32) * 0.1   # W_a.weight (out, in)
    ba = jax.random.normal(k3, (1, H), dtype=jnp.float32) * 0.1   # W_a.bias
    w = jax.random.normal(k4, (1, H), dtype=jnp.float32) * 0.1    # W.weight
    b = jax.random.normal(k5, (1, 1), dtype=jnp.float32) * 0.1    # W.bias

    # batch_tile=8 -> 2-step, sublane-aligned grid (exercises the pipeline).
    utter, att_w = attentive_pooling(batch_rep, att_mask, wa, ba, w, b,
                                     batch_tile=8)
    jax.block_until_ready((utter, att_w))

    utter_ref, att_w_ref = reference(batch_rep, att_mask, wa, ba, w, b)
    assert utter.shape == (B, H) and att_w.shape == (B, T, 1)
    # bf16 MXU operands for the first matmul => bf16-level tolerance vs. the
    # pure-f32 reference; softmax normalization itself is exact.
    assert jnp.allclose(att_w, att_w_ref, atol=2e-2, rtol=2e-2)
    assert jnp.allclose(utter, utter_ref, atol=2e-2, rtol=2e-2)

    print("KERNEL_OK")
</pallas_src>

<mosaic_0001>
module attributes {stable_mosaic.version = 11 : i64} {
  func.func @attentive_pooling_kernel(%arg0: i32, %arg1: memref<8x8x32xf32, #tpu.memory_space<vmem>>, %arg2: memref<8x8xf32, #tpu.memory_space<vmem>>, %arg3: memref<32x32xbf16, #tpu.memory_space<vmem>>, %arg4: memref<1x32xf32, #tpu.memory_space<vmem>>, %arg5: memref<1x32xf32, #tpu.memory_space<vmem>>, %arg6: memref<1x1xf32, #tpu.memory_space<smem>>, %arg7: memref<8x32xf32, #tpu.memory_space<vmem>>, %arg8: memref<8x8xf32, #tpu.memory_space<vmem>>) attributes {dimension_semantics = [#tpu.dimension_semantics<parallel>], iteration_bounds = array<i64: 2>, scalar_prefetch = 0 : i64, scratch_operands = 0 : i64, tpu.core_type = #tpu.core_type<tc>, window_params = [{transform_indices = @transform_0, window_bounds = array<i64: 8, 8, 32>}, {transform_indices = @transform_1, window_bounds = array<i64: 8, 8>}, {pipeline_mode = #tpu.pipeline_mode<synchronous>, transform_indices = @transform_2, window_bounds = array<i64: 32, 32>}, {pipeline_mode = #tpu.pipeline_mode<synchronous>, transform_indices = @transform_3, window_bounds = array<i64: 1, 32>}, {pipeline_mode = #tpu.pipeline_mode<synchronous>, transform_indices = @transform_4, window_bounds = array<i64: 1, 32>}, {transform_indices = @transform_5, window_bounds = array<i64: 1, 1>}, {transform_indices = @transform_6, window_bounds = array<i64: 8, 32>}, {transform_indices = @transform_7, window_bounds = array<i64: 8, 8>}]} {
    %c0 = arith.constant 0 : index
    %c0_0 = arith.constant 0 : index
    %c0_1 = arith.constant 0 : index
    %0 = vector.load %arg1[%c0, %c0_0, %c0_1] : memref<8x8x32xf32, #tpu.memory_space<vmem>>, vector<8x8x32xf32>
    %1 = vector.shape_cast %0 : vector<8x8x32xf32> to vector<64x32xf32>
    %2 = arith.truncf %1 : vector<64x32xf32> to vector<64x32xbf16>
    %c0_2 = arith.constant 0 : index
    %c0_3 = arith.constant 0 : index
    %3 = vector.load %arg3[%c0_2, %c0_3] : memref<32x32xbf16, #tpu.memory_space<vmem>>, vector<32x32xbf16>
    %cst = arith.constant dense<0.000000e+00> : vector<64x32xf32>
    %4 = tpu.matmul %2, %3, %cst {dimension_numbers = #tpu.dot_dimension_numbers<[1], [0], [0], [1], [0, 0, 1, 1], [], []>} : vector<64x32xbf16>, vector<32x32xbf16>, vector<64x32xf32> -> vector<64x32xf32>
    %c0_4 = arith.constant 0 : index
    %c0_5 = arith.constant 0 : index
    %5 = vector.load %arg4[%c0_4, %c0_5] : memref<1x32xf32, #tpu.memory_space<vmem>>, vector<1x32xf32>
    %6 = vector.broadcast %5 : vector<1x32xf32> to vector<64x32xf32>
    %7 = arith.addf %4, %6 : vector<64x32xf32>
    %cst_6 = arith.constant 0.000000e+00 : f32
    %8 = vector.broadcast %cst_6 : f32 to vector<64x32xf32>
    %9 = arith.maximumf %7, %8 : vector<64x32xf32>
    %10 = vector.shape_cast %9 : vector<64x32xf32> to vector<8x8x32xf32>
    %c0_7 = arith.constant 0 : index
    %c0_8 = arith.constant 0 : index
    %11 = memref.load %arg6[%c0_7, %c0_8] : memref<1x1xf32, #tpu.memory_space<smem>>
    %c0_9 = arith.constant 0 : index
    %c0_10 = arith.constant 0 : index
    %12 = vector.load %arg5[%c0_9, %c0_10] : memref<1x32xf32, #tpu.memory_space<vmem>>, vector<1x32xf32>
    %13 = vector.shape_cast %12 : vector<1x32xf32> to vector<1x1x32xf32>
    %14 = vector.broadcast %13 : vector<1x1x32xf32> to vector<8x8x32xf32>
    %15 = arith.mulf %10, %14 : vector<8x8x32xf32>
    %cst_11 = arith.constant dense<0.000000e+00> : vector<8x8xf32>
    %16 = vector.multi_reduction <add>, %15, %cst_11 [2] : vector<8x8x32xf32> to vector<8x8xf32>
    %17 = vector.broadcast %11 : f32 to vector<8x8xf32>
    %18 = arith.addf %16, %17 : vector<8x8xf32>
    %c0_12 = arith.constant 0 : index
    %c0_13 = arith.constant 0 : index
    %19 = vector.load %arg2[%c0_12, %c0_13] : memref<8x8xf32, #tpu.memory_space<vmem>>, vector<8x8xf32>
    %20 = arith.addf %18, %19 : vector<8x8xf32>
    %cst_14 = arith.constant dense<0xFF800000> : vector<8xf32>
    %21 = vector.multi_reduction <maximumf>, %20, %cst_14 [1] : vector<8x8xf32> to vector<8xf32>
    %22 = vector.shape_cast %21 : vector<8xf32> to vector<8x1xf32>
    %23 = vector.broadcast %22 : vector<8x1xf32> to vector<8x8xf32>
    %24 = arith.subf %20, %23 : vector<8x8xf32>
    %25 = math.exp %24 : vector<8x8xf32>
    %cst_15 = arith.constant dense<0.000000e+00> : vector<8xf32>
    %26 = vector.multi_reduction <add>, %25, %cst_15 [1] : vector<8x8xf32> to vector<8xf32>
    %27 = vector.shape_cast %26 : vector<8xf32> to vector<8x1xf32>
    %28 = tpu.reciprocal %27 : vector<8x1xf32> -> vector<8x1xf32>
    %29 = vector.broadcast %28 : vector<8x1xf32> to vector<8x8xf32>
    %30 = arith.mulf %25, %29 : vector<8x8xf32>
    %c0_16 = arith.constant 0 : index
    %c0_17 = arith.constant 0 : index
    %31 = vector.load %arg8[%c0_16, %c0_17] : memref<8x8xf32, #tpu.memory_space<vmem>>, vector<8x8xf32>
    tpu.vector_store %arg8[%c0_16, %c0_17], %30 {strides = array<i32>} : memref<8x8xf32, #tpu.memory_space<vmem>>, vector<8x8xf32>,
    %32 = vector.shape_cast %30 : vector<8x8xf32> to vector<8x8x1xf32>
    %33 = vector.broadcast %32 : vector<8x8x1xf32> to vector<8x8x32xf32>
    %34 = arith.mulf %0, %33 : vector<8x8x32xf32>
    %cst_18 = arith.constant dense<0.000000e+00> : vector<8x32xf32>
    %35 = vector.multi_reduction <add>, %34, %cst_18 [1] : vector<8x8x32xf32> to vector<8x32xf32>
    %c0_19 = arith.constant 0 : index
    %c0_20 = arith.constant 0 : index
    %36 = vector.load %arg7[%c0_19, %c0_20] : memref<8x32xf32, #tpu.memory_space<vmem>>, vector<8x32xf32>
    tpu.vector_store %arg7[%c0_19, %c0_20], %35 {strides = array<i32>} : memref<8x32xf32, #tpu.memory_space<vmem>>, vector<8x32xf32>,
    return
  }
  func.func @transform_0(%arg0: i32) -> (i32, i32, i32) {
    %c0_i32 = arith.constant 0 : i32
    %c0_i32_0 = arith.constant 0 : i32
    %c0_i32_1 = arith.constant 0 : i32
    return %arg0, %c0_i32, %c0_i32_0 : i32, i32, i32
  }
  func.func @transform_1(%arg0: i32) -> (i32, i32) {
    %c0_i32 = arith.constant 0 : i32
    %c0_i32_0 = arith.constant 0 : i32
    return %arg0, %c0_i32 : i32, i32
  }
  func.func @transform_2(%arg0: i32) -> (i32, i32) {
    %c0_i32 = arith.constant 0 : i32
    %c0_i32_0 = arith.constant 0 : i32
    %c0_i32_1 = arith.constant 0 : i32
    return %c0_i32, %c0_i32_0 : i32, i32
  }
  func.func @transform_3(%arg0: i32) -> (i32, i32) {
    %c0_i32 = arith.constant 0 : i32
    %c0_i32_0 = arith.constant 0 : i32
    %c0_i32_1 = arith.constant 0 : i32
    return %c0_i32, %c0_i32_0 : i32, i32
  }
  func.func @transform_4(%arg0: i32) -> (i32, i32) {
    %c0_i32 = arith.constant 0 : i32
    %c0_i32_0 = arith.constant 0 : i32
    %c0_i32_1 = arith.constant 0 : i32
    return %c0_i32, %c0_i32_0 : i32, i32
  }
  func.func @transform_5(%arg0: i32) -> (i32, i32) {
    %c0_i32 = arith.constant 0 : i32
    %c0_i32_0 = arith.constant 0 : i32
    %c0_i32_1 = arith.constant 0 : i32
    return %c0_i32, %c0_i32_0 : i32, i32
  }
  func.func @transform_6(%arg0: i32) -> (i32, i32) {
    %c0_i32 = arith.constant 0 : i32
    %c0_i32_0 = arith.constant 0 : i32
    return %arg0, %c0_i32 : i32, i32
  }
  func.func @transform_7(%arg0: i32) -> (i32, i32) {
    %c0_i32 = arith.constant 0 : i32
    %c0_i32_0 = arith.constant 0 : i32
    return %arg0, %c0_i32 : i32, i32
  }
}

</mosaic_0001>

<llo_original>
// kernel: tpu_custom_call.1
$region0: #{tpu_custom_call.1}
  #allocation0 [shape = 'u32[]', space=smem, size = 0x4, offset = 0x4, fixed_abs, tag = 'smem constant byte address 0x4 - core index']
  #allocation1 [shape = 'u32[144,128]{1,0:T(1,128)}', space=vmem, size = 0x12000, scoped, tag = 'internal scratch']
  #allocation2 [shape = 'f32[1,1]{1,0:T(1,128)S(6)}', space=smem, size = 0x200, scoped, tag = 'scoped memory for tpu_custom_call.1']
  %s0 = inlined_call_operand.hbm [shape: f32[16,8,32], index: 0, kind: input, shape index: {}]
  %s1 = inlined_call_operand.vmem [shape: f32[16,8], index: 1, kind: input, shape index: {}]
  %s2 = inlined_call_operand.vmem [shape: bf16[32,32], index: 2, kind: input, shape index: {}]
  %s3 = inlined_call_operand.vmem [shape: f32[1,32], index: 3, kind: input, shape index: {}]
  %s4 = inlined_call_operand.vmem [shape: f32[1,32], index: 4, kind: input, shape index: {}]
  %s5 = inlined_call_operand.<no memory space> [shape: f32[1,1], index: 5, kind: input, shape index: {}]
  %s6 = inlined_call_operand.hbm [shape: f32[16,32], index: 6, kind: output, shape index: {0}]
  %s7 = inlined_call_operand.vmem [shape: f32[16,8], index: 7, kind: output, shape index: {1}]
  %8 = xla_tuple %s6, %s7
  %s9 = sld [smem:[#allocation0]]
  $region69: #{tpu_custom_call.1} parent=0
    _
  %s11 = ssub.s32 1, %s9
  %s12 = scalar_select 0, %s11, %s9
  %13 = sst [smem:[#allocation2]] %s5
  $region1: #{tpu_custom_call.1} parent=0
    #allocation3 [shape = 'u8[65536]{0}', space=vmem, size = 0x10000, scoped, tag = 'input window, operand 0']
    #allocation4 [shape = 's32[2]{0}', space=sflag, size = 0x8, scoped, tag = 'scoped memory for tpu_custom_call.1']
    #allocation5 [shape = 's32[2]{0}', space=sflag, size = 0x8, scoped, tag = 'scoped memory for tpu_custom_call.1']
    #allocation6 [shape = 'u8[8192]{0}', space=vmem, size = 0x2000, scoped, tag = 'output window, operand 0']
    %14 = vsyncpa [#allocation4], 0
    %s15 = scalar_lea.sflag [#allocation4], 1
    %16 = vsyncpa %s15, 0
    %17 = vsyncpa [#allocation5], 0
    %s18 = scalar_lea.sflag [#allocation5], 1
    %19 = vsyncpa %s18, 0
    loop: start=0, step=1, limit=4
    $region2: #{tpu_custom_call.1} parent=1 // loop_pre_header
      _
    $region3: #{tpu_custom_call.1} parent=1 // loop_header
      %s21 = sphi 0, %s25
      %p22 = scmp.ge.s32.totalorder %s21, 4
      %s31 = sphi 0, %s33
      %s34 = sphi 0, %s31
      %s35 = sphi 0, %s34
      %s51 = sphi 0, %s35
      %s57 = sphi 0, %s59
      %s60 = sphi 0, %s57
      %s61 = sphi 0, %s60
      %s77 = sphi 0, %s61
      %s81 = sphi 0, %s81
      %s83 = sphi 0, %s81
      %s84 = sphi 0, %s83
      %s98 = sphi 0, %s84
      %s102 = sphi 0, %s102
      %s104 = sphi 0, %s102
      %s105 = sphi 0, %s104
      %s119 = sphi 0, %s105
      %s123 = sphi 0, %s123
      %s125 = sphi 0, %s123
      %s126 = sphi 0, %s125
      %s140 = sphi 0, %s126
      %s144 = sphi 0, %s144
      %s146 = sphi 0, %s144
      %s147 = sphi 0, %s146
      %s161 = sphi 0, %s147
      %s167 = sphi 0, %s169
      %s170 = sphi 0, %s167
      %s171 = sphi 0, %s170
      %s187 = sphi 0, %s171
      %s193 = sphi 0, %s195
      %s196 = sphi 0, %s193
      %s197 = sphi 0, %s196
      %s213 = sphi 0, %s197
    $region4: #{tpu_custom_call.1} parent=1 // loop_header_branch
      %24 = sbr.rel (%p22) target = $region8
    $region5: #{tpu_custom_call.1} parent=1 // loop_body
      %s26 = ssub.s32 %s21, 1
      %s27 = ssub.s32 %s21, 2
      %s28 = sadd.s32 %s21, 1
      %s29 = ssub.s32 %s21, %s28
      %p30 = scmp.eq.s32.totalorder %s29, 0
      %s32 = sadd.s32 %s31, 1
      %s33 = scalar_select %p30, %s31, %s32
      %p36 = pneg %p30
      %p37 = scmp.eq.s32.totalorder %s21, 1
      %p38 = por %p36, %p37
      %p39 = scmp.ne.s32.totalorder %s31, %s34
      %p40 = scmp.eq.s32.totalorder %s21, 0
      %p41 = por %p39, %p40
      %p42 = scmp.ne.s32.totalorder %s31, %s34
      %p43 = scmp.eq.s32.totalorder %s26, 1
      %p44 = por %p42, %p43
      %p45 = scmp.ne.s32.totalorder %s34, %s35
      %p46 = scmp.eq.s32.totalorder %s26, 0
      %p47 = por %p45, %p46
      %p48 = scmp.ne.s32.totalorder %s34, %s35
      %p49 = scmp.eq.s32.totalorder %s27, 1
      %p50 = por %p48, %p49
      %p52 = scmp.ne.s32.totalorder %s35, %s51
      %p53 = scmp.eq.s32.totalorder %s27, 0
      %p54 = por %p52, %p53
      %s55 = ssub.s32 %s21, %s28
      %p56 = scmp.eq.s32.totalorder %s55, 0
      %s58 = sadd.s32 %s57, 1
      %s59 = scalar_select %p56, %s57, %s58
      %p62 = pneg %p56
      %p63 = scmp.eq.s32.totalorder %s21, 1
      %p64 = por %p62, %p63
      %p65 = scmp.ne.s32.totalorder %s57, %s60
      %p66 = scmp.eq.s32.totalorder %s21, 0
      %p67 = por %p65, %p66
      %p68 = scmp.ne.s32.totalorder %s57, %s60
      %p69 = scmp.eq.s32.totalorder %s26, 1
      %p70 = por %p68, %p69
      %p71 = scmp.ne.s32.totalorder %s60, %s61
      %p72 = scmp.eq.s32.totalorder %s26, 0
      %p73 = por %p71, %p72
      %p74 = scmp.ne.s32.totalorder %s60, %s61
      %p75 = scmp.eq.s32.totalorder %s27, 1
      %p76 = por %p74, %p75
      %p78 = scmp.ne.s32.totalorder %s61, %s77
      %p79 = scmp.eq.s32.totalorder %s27, 0
      %p80 = por %p78, %p79
      %s82 = sadd.s32 %s81, 1
      %p85 = scmp.eq.s32.totalorder %s21, 1
      %p86 = scmp.ne.s32.totalorder %s81, %s83
      %p87 = scmp.eq.s32.totalorder %s21, 0
      %p88 = por %p86, %p87
      %p89 = scmp.ne.s32.totalorder %s81, %s83
      %p90 = scmp.eq.s32.totalorder %s26, 1
      %p91 = por %p89, %p90
      %p92 = scmp.ne.s32.totalorder %s83, %s84
      %p93 = scmp.eq.s32.totalorder %s26, 0
      %p94 = por %p92, %p93
      %p95 = scmp.ne.s32.totalorder %s83, %s84
      %p96 = scmp.eq.s32.totalorder %s27, 1
      %p97 = por %p95, %p96
      %p99 = scmp.ne.s32.totalorder %s84, %s98
      %p100 = scmp.eq.s32.totalorder %s27, 0
      %p101 = por %p99, %p100
      %s103 = sadd.s32 %s102, 1
      %p106 = scmp.eq.s32.totalorder %s21, 1
      %p107 = scmp.ne.s32.totalorder %s102, %s104
      %p108 = scmp.eq.s32.totalorder %s21, 0
      %p109 = por %p107, %p108
      %p110 = scmp.ne.s32.totalorder %s102, %s104
      %p111 = scmp.eq.s32.totalorder %s26, 1
      %p112 = por %p110, %p111
      %p113 = scmp.ne.s32.totalorder %s104, %s105
      %p114 = scmp.eq.s32.totalorder %s26, 0
      %p115 = por %p113, %p114
      %p116 = scmp.ne.s32.totalorder %s104, %s105
      %p117 = scmp.eq.s32.totalorder %s27, 1
      %p118 = por %p116, %p117
      %p120 = scmp.ne.s32.totalorder %s105, %s119
      %p121 = scmp.eq.s32.totalorder %s27, 0
      %p122 = por %p120, %p121
      %s124 = sadd.s32 %s123, 1
      %p127 = scmp.eq.s32.totalorder %s21, 1
      %p128 = scmp.ne.s32.totalorder %s123, %s125
      %p129 = scmp.eq.s32.totalorder %s21, 0
      %p130 = por %p128, %p129
      %p131 = scmp.ne.s32.totalorder %s123, %s125
      %p132 = scmp.eq.s32.totalorder %s26, 1
      %p133 = por %p131, %p132
      %p134 = scmp.ne.s32.totalorder %s125, %s126
      %p135 = scmp.eq.s32.totalorder %s26, 0
      %p136 = por %p134, %p135
      %p137 = scmp.ne.s32.totalorder %s125, %s126
      %p138 = scmp.eq.s32.totalorder %s27, 1
      %p139 = por %p137, %p138
      %p141 = scmp.ne.s32.totalorder %s126, %s140
      %p142 = scmp.eq.s32.totalorder %s27, 0
      %p143 = por %p141, %p142
      %s145 = sadd.s32 %s144, 1
      %p148 = scmp.eq.s32.totalorder %s21, 1
      %p149 = scmp.ne.s32.totalorder %s144, %s146
      %p150 = scmp.eq.s32.totalorder %s21, 0
      %p151 = por %p149, %p150
      %p152 = scmp.ne.s32.totalorder %s144, %s146
      %p153 = scmp.eq.s32.totalorder %s26, 1
      %p154 = por %p152, %p153
      %p155 = scmp.ne.s32.totalorder %s146, %s147
      %p156 = scmp.eq.s32.totalorder %s26, 0
      %p157 = por %p155, %p156
      %p158 = scmp.ne.s32.totalorder %s146, %s147
      %p159 = scmp.eq.s32.totalorder %s27, 1
      %p160 = por %p158, %p159
      %p162 = scmp.ne.s32.totalorder %s147, %s161
      %p163 = scmp.eq.s32.totalorder %s27, 0
      %p164 = por %p162, %p163
      %s165 = ssub.s32 %s21, %s28
      %p166 = scmp.eq.s32.totalorder %s165, 0
      %s168 = sadd.s32 %s167, 1
      %s169 = scalar_select %p166, %s167, %s168
      %p172 = pneg %p166
      %p173 = scmp.eq.s32.totalorder %s21, 1
      %p174 = por %p172, %p173
      %p175 = scmp.ne.s32.totalorder %s167, %s170
      %p176 = scmp.eq.s32.totalorder %s21, 0
      %p177 = por %p175, %p176
      %p178 = scmp.ne.s32.totalorder %s167, %s170
      %p179 = scmp.eq.s32.totalorder %s26, 1
      %p180 = por %p178, %p179
      %p181 = scmp.ne.s32.totalorder %s170, %s171
      %p182 = scmp.eq.s32.totalorder %s26, 0
      %p183 = por %p181, %p182
      %p184 = scmp.ne.s32.totalorder %s170, %s171
      %p185 = scmp.eq.s32.totalorder %s27, 1
      %p186 = por %p184, %p185
      %p188 = scmp.ne.s32.totalorder %s171, %s187
      %p189 = scmp.eq.s32.totalorder %s27, 0
      %p190 = por %p188, %p189
      %s191 = ssub.s32 %s21, %s28
      %p192 = scmp.eq.s32.totalorder %s191, 0
      %s194 = sadd.s32 %s193, 1
      %s195 = scalar_select %p192, %s193, %s194
      %p198 = pneg %p192
      %p199 = scmp.eq.s32.totalorder %s21, 1
      %p200 = por %p198, %p199
      %p201 = scmp.ne.s32.totalorder %s193, %s196
      %p202 = scmp.eq.s32.totalorder %s21, 0
      %p203 = por %p201, %p202
      %p204 = scmp.ne.s32.totalorder %s193, %s196
      %p205 = scmp.eq.s32.totalorder %s26, 1
      %p206 = por %p204, %p205
      %p207 = scmp.ne.s32.totalorder %s196, %s197
      %p208 = scmp.eq.s32.totalorder %s26, 0
      %p209 = por %p207, %p208
      %p210 = scmp.ne.s32.totalorder %s196, %s197
      %p211 = scmp.eq.s32.totalorder %s27, 1
      %p212 = por %p210, %p211
      %p214 = scmp.ne.s32.totalorder %s197, %s213
      %p215 = scmp.eq.s32.totalorder %s27, 0
      %p216 = por %p214, %p215
      %p217 = scmp.le.s32.totalorder 1, %s21
      %p218 = scmp.lt.s32.totalorder %s21, 3
      %p219 = pnand %p217, %p218
      %p220 = pneg %p219
      // Predicated region
      $region9: #{tpu_custom_call.1} parent=5 // pred_check
        _
      $region10: #{tpu_custom_call.1} parent=5 // pred_check_branch
        %222 = sbr.rel (%p219) target = $region12
      $region11: #{tpu_custom_call.1} parent=5 // pred_region
        %s223 = ssub.s32 %s21, 1
        // Predicated region
        $region13: #{tpu_custom_call.1} parent=11 // pred_check
          %p224 = pneg %p94
        $region14: #{tpu_custom_call.1} parent=11 // pred_check_branch
          %226 = sbr.rel (%p224) target = $region16
        $region15: #{tpu_custom_call.1} parent=11 // pred_region
          _
        $region16: #{tpu_custom_call.1} parent=11 // pred_fallthru
          _
        // Predicated region
        $region17: #{tpu_custom_call.1} parent=11 // pred_check
          %p227 = pneg %p115
        $region18: #{tpu_custom_call.1} parent=11 // pred_check_branch
          %229 = sbr.rel (%p227) target = $region20
        $region19: #{tpu_custom_call.1} parent=11 // pred_region
          _
        $region20: #{tpu_custom_call.1} parent=11 // pred_fallthru
          _
        // Predicated region
        $region21: #{tpu_custom_call.1} parent=11 // pred_check
          %p230 = pneg %p136
        $region22: #{tpu_custom_call.1} parent=11 // pred_check_branch
          %232 = sbr.rel (%p230) target = $region24
        $region23: #{tpu_custom_call.1} parent=11 // pred_region
          _
        $region24: #{tpu_custom_call.1} parent=11 // pred_fallthru
          _
        // Predicated region
        $region25: #{tpu_custom_call.1} parent=11 // pred_check
          %p233 = pneg %p157
        $region26: #{tpu_custom_call.1} parent=11 // pred_check_branch
          %235 = sbr.rel (%p233) target = $region28
        $region27: #{tpu_custom_call.1} parent=11 // pred_region
          _
        $region28: #{tpu_custom_call.1} parent=11 // pred_fallthru
          _
      $region12: #{tpu_custom_call.1} parent=5 // pred_fallthru
        _
      %p236 = scmp.lt.s32.totalorder %s21, 2
      // Predicated region
      $region29: #{tpu_custom_call.1} parent=5 // pred_check
        %p237 = pneg %p236
      $region30: #{tpu_custom_call.1} parent=5 // pred_check_branch
        %239 = sbr.rel (%p237) target = $region32
      $region31: #{tpu_custom_call.1} parent=5 // pred_region
        // Predicated region
        $region33: #{tpu_custom_call.1} parent=31 // pred_check
          %p240 = pneg %p41
        $region34: #{tpu_custom_call.1} parent=31 // pred_check_branch
          %242 = sbr.rel (%p240) target = $region36
        $region35: #{tpu_custom_call.1} parent=31 // pred_region
          %s243 = sand.u32 %s31, 1
          %s244 = scalar_lea.sflag [#allocation4], %s243
          %s245 = sand.u32 %s31, 1
          %s246 = smul.addr %s245, 64
          %s247 = scalar_lea.vmem [#allocation3], %s246
          %s248 = smul.u32 8, %s21
          %s250 = ssub.s32 1024, 1024
          %251 = vsyncadd %s244, %s250
          %s252 = smul.addr %s248, 128
          %s253 = scalar_lea.hbm %s0, %s252
          %s254 = sshll.u32 %s247, 4
          %s255 = int_to_ptr.vmem [resolvable:$true] %s254
          %260 = dma.hbm_to_vmem [thread:$0]  %s253, 1024, %s255, %s244, 128, 128, 8
        $region36: #{tpu_custom_call.1} parent=31 // pred_fallthru
          _
        // Predicated region
        $region37: #{tpu_custom_call.1} parent=31 // pred_check
          %p261 = pneg %p67
        $region38: #{tpu_custom_call.1} parent=31 // pred_check_branch
          %263 = sbr.rel (%p261) target = $region40
        $region39: #{tpu_custom_call.1} parent=31 // pred_region
          %p264 = scmp.lt.s32.totalorder %s21, 1
          %s265 = scalar_select %p264, %s21, 1
          %s266 = smul.addr %s265, 8
          %s267 = scalar_lea.vmem %s1, %s266
        $region40: #{tpu_custom_call.1} parent=31 // pred_fallthru
          _
      $region32: #{tpu_custom_call.1} parent=5 // pred_fallthru
        _
      %p268 = scmp.le.s32.totalorder 1, %s21
      %p269 = scmp.lt.s32.totalorder %s21, 3
      %p270 = pnand %p268, %p269
      %p271 = pneg %p270
      // Predicated region
      $region41: #{tpu_custom_call.1} parent=5 // pred_check
        _
      $region42: #{tpu_custom_call.1} parent=5 // pred_check_branch
        %273 = sbr.rel (%p270) target = $region44
      $region43: #{tpu_custom_call.1} parent=5 // pred_region
        %s274 = ssub.s32 %s21, 1
        %s275 = sand.u32 %s34, 1
        %s276 = scalar_lea.sflag [#allocation4], %s275
        %s277 = sand.u32 %s34, 1
        %s278 = smul.addr %s277, 64
        %s279 = scalar_lea.vmem [#allocation3], %s278
        // Predicated region
        $region45: #{tpu_custom_call.1} parent=43 // pred_check
          %p280 = pneg %p47
        $region46: #{tpu_custom_call.1} parent=43 // pred_check_branch
          %282 = sbr.rel (%p280) target = $region48
        $region47: #{tpu_custom_call.1} parent=43 // pred_region
          %283 = dma.done %s276, 1024
        $region48: #{tpu_custom_call.1} parent=43 // pred_fallthru
          _
        %s284 = sand.u32 %s34, 1
        %s285 = scalar_lea.sflag [#allocation4], %s284
        %s286 = sand.u32 %s34, 1
        %s287 = smul.addr %s286, 64
        %s288 = scalar_lea.vmem [#allocation3], %s287
        %p289 = pneg %p47
        %p290 = pneg %p44
        %p291 = scmp.lt.s32.totalorder %s26, 1
        %s292 = scalar_select %p291, %s26, 1
        %s293 = smul.addr %s292, 8
        %s294 = scalar_lea.vmem %s1, %s293
        %p295 = pneg %p73
        %p296 = pneg %p70
        %p297 = pneg %p94
        %p298 = pneg %p91
        %p299 = pneg %p115
        %p300 = pneg %p112
        %p301 = pneg %p136
        %p302 = pneg %p133
        %p303 = pneg %p157
        %p304 = pneg %p154
        %p305 = pneg %p183
        %p306 = pneg %p180
        %s307 = sand.u32 %s170, 1
        %s308 = scalar_lea.sflag [#allocation5], %s307
        %s309 = sand.u32 %s170, 1
        %s310 = smul.addr %s309, 8
        %s311 = scalar_lea.vmem [#allocation6], %s310
        %p312 = pneg %p209
        %p313 = pneg %p206
        %p314 = scmp.lt.s32.totalorder %s26, 1
        %s315 = scalar_select %p314, %s26, 1
        %s316 = smul.addr %s315, 8
        %s317 = scalar_lea.vmem %s7, %s316
        %s318 = smul.u32 8, %s26
        %p319 = scmp.lt.s32.totalorder %s26, 1
        %s320 = scalar_select %p319, %s26, 1
        %s321 = smul.addr %s320, 8
        %s322 = scalar_lea.vmem %s1, %s321
        %p323 = scmp.lt.s32.totalorder %s26, 1
        %s324 = scalar_select %p323, %s26, 1
        %s325 = smul.addr %s324, 8
        %s326 = scalar_lea.vmem %s7, %s325
        %v328 = vld [vmem:[%s279] sm:$0xff]
        %v329 = vld [vmem:[%s279 + $0x8] sm:$0xff]
        %v330 = vld [vmem:[%s279 + $0x10] sm:$0xff]
        %v331 = vld [vmem:[%s279 + $0x18] sm:$0xff]
        %v332 = vld [vmem:[%s279 + $0x20] sm:$0xff]
        %v333 = vld [vmem:[%s279 + $0x28] sm:$0xff]
        %v334 = vld [vmem:[%s279 + $0x30] sm:$0xff]
        %v335 = vld [vmem:[%s279 + $0x38] sm:$0xff]
        %v336 = vpack.c.bf16 %v329, %v328
        %v337 = vpack.c.bf16 %v331, %v330
        %v338 = vpack.c.bf16 %v333, %v332
        %v339 = vpack.c.bf16 %v335, %v334
        %v340 = vld [vmem:[%s2] sm:$0xf]
        %v341 = vld [vmem:[%s2 + $0x4] sm:$0xf]
        %v342 = vld [vmem:[%s2 + $0x8] sm:$0xf]
        %v343 = vld [vmem:[%s2 + $0xc] sm:$0xf]
        %v344 = vld [vmem:[%s3] sm:$0x1]
        %v346 = vlaneseq
        %v347 = vshrl.u32 %v346, 7
        %v348 = vsub.s32 0, %v347
        %v349 = vrot.slane %v344, %v348
        %v355 = vunpack.c.l.b16 %v340
        %v356 = vunpack.c.l.b16 %v341
        %v357 = vunpack.c.l.b16 %v342
        %v358 = vunpack.c.l.b16 %v343
        %v359 = vpack.c.b16 %v356, %v355
        %v360 = vpack.c.b16 %v358, %v357
        %vm363 = vcmask 261120
        %v365 = vsel %vm363, %v336, 0
        %v368 = vsel %vm363, %v337, 0
        %v371 = vsel %vm363, %v338, 0
        %v374 = vsel %vm363, %v339, 0
        %376 = vmatprep.subr.bf16.mxu0 0
        %377 = vmatpush1.bf16.msra.mxu0 %v359
        %378 = vmatprep.subr.bf16.mxu0 0
        %379 = vmatpush1.bf16.msra.mxu0 %v360
        %380 = vmatprep.subr.bf16.mxu0 0
        %381 = vmatpush1.bf16.msra.mxu0 0
        %382 = vmatprep.subr.bf16.mxu0 0
        %383 = vmatpush1.bf16.msra.mxu0 0
        %384 = vmatprep.subr.bf16.mxu0 0
        %385 = vmatpush1.bf16.msra.mxu0 0
        %386 = vmatprep.subr.bf16.mxu0 0
        %387 = vmatpush1.bf16.msra.mxu0 0
        %388 = vmatprep.subr.bf16.mxu0 0
        %389 = vmatpush1.bf16.msra.mxu0 0
        %390 = vmatprep.subr.bf16.mxu0 0
        %391 = vmatpush1.bf16.msra.mxu0 0
        %392 = vmatprep.subr.bf16.mxu0 0
        %393 = vmatpush1.bf16.msra.mxu0 0
        %394 = vmatprep.subr.bf16.mxu0 0
        %395 = vmatpush1.bf16.msra.mxu0 0
        %396 = vmatprep.subr.bf16.mxu0 0
        %397 = vmatpush1.bf16.msra.mxu0 0
        %398 = vmatprep.subr.bf16.mxu0 0
        %399 = vmatpush1.bf16.msra.mxu0 0
        %400 = vmatprep.subr.bf16.mxu0 0
        %401 = vmatpush1.bf16.msra.mxu0 0
        %402 = vmatprep.subr.bf16.mxu0 0
        %403 = vmatpush1.bf16.msra.mxu0 0
        %404 = vmatprep.subr.bf16.mxu0 0
        %405 = vmatpush1.bf16.msra.mxu0 0
        %406 = vmatprep.subr.bf16.mxu0 0
        %407 = vmatpush1.bf16.msra.mxu0 0
        %408 = vmatprep.mubr.bf16.mxu0 0
        %409 = vmatmul.mubr.bf16.gmra.mrb[0].mxu0 %v365
        %v410 = vpop.f32.mrb[0].mxu0
        %v411 = vadd.f32 %v349, %v410
        %v412 = vpop.f32.mrb[0].mxu0
        %v413 = vpop.f32.mrb[0].mxu0
        %v414 = vadd.f32 %v349, %v413
        %v415 = vpop.f32.mrb[0].mxu0
        %416 = vmatprep.mubr.bf16.mxu0 0
        %417 = vmatmul.mubr.bf16.gmra.mrb[0].mxu0 %v368
        %v418 = vpop.f32.mrb[0].mxu0
        %v419 = vadd.f32 %v349, %v418
        %v420 = vpop.f32.mrb[0].mxu0
        %v421 = vpop.f32.mrb[0].mxu0
        %v422 = vadd.f32 %v349, %v421
        %v423 = vpop.f32.mrb[0].mxu0
        %424 = vmatprep.mubr.bf16.mxu0 0
        %425 = vmatmul.mubr.bf16.gmra.mrb[0].mxu0 %v371
        %v426 = vpop.f32.mrb[0].mxu0
        %v427 = vadd.f32 %v349, %v426
        %v428 = vpop.f32.mrb[0].mxu0
        %v429 = vpop.f32.mrb[0].mxu0
        %v430 = vadd.f32 %v349, %v429
        %v431 = vpop.f32.mrb[0].mxu0
        %432 = vmatprep.mubr.bf16.mxu0 0
        %433 = vmatmul.mubr.bf16.gmra.mrb[0].mxu0 %v374
        %v434 = vpop.f32.mrb[0].mxu0
        %v435 = vadd.f32 %v349, %v434
        %v436 = vpop.f32.mrb[0].mxu0
        %v437 = vpop.f32.mrb[0].mxu0
        %v438 = vadd.f32 %v349, %v437
        %v439 = vpop.f32.mrb[0].mxu0
        %440 = vdwg.mxu0
        %v441 = vmax.f32 %v411, 0.0
        %v442 = vmax.f32 %v414, 0.0
        %v443 = vmax.f32 %v419, 0.0
        %v444 = vmax.f32 %v422, 0.0
        %v445 = vmax.f32 %v427, 0.0
        %v446 = vmax.f32 %v430, 0.0
        %v447 = vmax.f32 %v435, 0.0
        %v448 = vmax.f32 %v438, 0.0
        %s449 = sld [smem:[#allocation2]]
        %v450 = vld [vmem:[%s4] sm:$0x1]
        %v452 = vlaneseq
        %v453 = vshrl.u32 %v452, 7
        %v454 = vsub.s32 0, %v453
        %v455 = vrot.slane %v450, %v454
        %v457 = vmul.f32 %v441, %v455
        %v458 = vmul.f32 %v442, %v455
        %v459 = vmul.f32 %v443, %v455
        %v460 = vmul.f32 %v444, %v455
        %v461 = vmul.f32 %v445, %v455
        %v462 = vmul.f32 %v446, %v455
        %v463 = vmul.f32 %v447, %v455
        %v464 = vmul.f32 %v448, %v455
        %v465 = vsel %vm363, %v457, 0.0
        %466 = vadd.xlane.f32.xlu0 %v465
        %v467 = vpop.xlane.xlu0 %466
        %v468 = vsel %vm363, %v458, 0.0
        %469 = vadd.xlane.f32.xlu0 %v468
        %v470 = vpop.xlane.xlu0 %469
        %v471 = vsel %vm363, %v459, 0.0
        %472 = vadd.xlane.f32.xlu0 %v471
        %v473 = vpop.xlane.xlu0 %472
        %v474 = vsel %vm363, %v460, 0.0
        %475 = vadd.xlane.f32.xlu0 %v474
        %v476 = vpop.xlane.xlu0 %475
        %v477 = vsel %vm363, %v461, 0.0
        %478 = vadd.xlane.f32.xlu0 %v477
        %v479 = vpop.xlane.xlu0 %478
        %v480 = vsel %vm363, %v462, 0.0
        %481 = vadd.xlane.f32.xlu0 %v480
        %v482 = vpop.xlane.xlu0 %481
        %v483 = vsel %vm363, %v463, 0.0
        %484 = vadd.xlane.f32.xlu0 %v483
        %v485 = vpop.xlane.xlu0 %484
        %v486 = vsel %vm363, %v464, 0.0
        %487 = vadd.xlane.f32.xlu0 %v486
        %v488 = vpop.xlane.xlu0 %487
        %v489 = vstv %s449
        %v490 = vadd.f32 %v467, %v489
        %v491 = vadd.f32 %v470, %v489
        %v492 = vadd.f32 %v473, %v489
        %v493 = vadd.f32 %v476, %v489
        %v494 = vadd.f32 %v479, %v489
        %v495 = vadd.f32 %v482, %v489
        %v496 = vadd.f32 %v485, %v489
        %v497 = vadd.f32 %v488, %v489
        %v498 = vld [vmem:[%s322] sm:$0xff]
        %v500 = vlaneseq
        %v501 = vshrl.u32 %v500, 7
        %v502 = vsub.s32 0, %v501
        %v503 = vrot.slane %v498, %v502
        %505 = vbcast.lane.b32.xlu0 %v503, 256
        %v506 = vpop.permute.xlu0 %505
        %v507 = vlaneseq
        %v508 = vshrl.u32 %v507, 7
        %v509 = vsub.s32 1, %v508
        %v510 = vrot.slane %v498, %v509
        %512 = vbcast.lane.b32.xlu0 %v510, 256
        %v513 = vpop.permute.xlu0 %512
        %v514 = vlaneseq
        %v515 = vshrl.u32 %v514, 7
        %v516 = vsub.s32 2, %v515
        %v517 = vrot.slane %v498, %v516
        %519 = vbcast.lane.b32.xlu0 %v517, 256
        %v520 = vpop.permute.xlu0 %519
        %v521 = vlaneseq
        %v522 = vshrl.u32 %v521, 7
        %v523 = vsub.s32 3, %v522
        %v524 = vrot.slane %v498, %v523
        %526 = vbcast.lane.b32.xlu0 %v524, 256
        %v527 = vpop.permute.xlu0 %526
        %v528 = vlaneseq
        %v529 = vshrl.u32 %v528, 7
        %v530 = vsub.s32 4, %v529
        %v531 = vrot.slane %v498, %v530
        %533 = vbcast.lane.b32.xlu0 %v531, 256
        %v534 = vpop.permute.xlu0 %533
        %v535 = vlaneseq
        %v536 = vshrl.u32 %v535, 7
        %v537 = vsub.s32 5, %v536
        %v538 = vrot.slane %v498, %v537
        %540 = vbcast.lane.b32.xlu0 %v538, 256
        %v541 = vpop.permute.xlu0 %540
        %v542 = vlaneseq
        %v543 = vshrl.u32 %v542, 7
        %v544 = vsub.s32 6, %v543
        %v545 = vrot.slane %v498, %v544
        %547 = vbcast.lane.b32.xlu0 %v545, 256
        %v548 = vpop.permute.xlu0 %547
        %v549 = vlaneseq
        %v550 = vshrl.u32 %v549, 7
        %v551 = vsub.s32 7, %v550
        %v552 = vrot.slane %v498, %v551
        %554 = vbcast.lane.b32.xlu0 %v552, 256
        %v555 = vpop.permute.xlu0 %554
        %v564 = vadd.f32 %v490, %v506
        %v565 = vadd.f32 %v491, %v513
        %v566 = vadd.f32 %v492, %v520
        %v567 = vadd.f32 %v493, %v527
        %v568 = vadd.f32 %v494, %v534
        %v569 = vadd.f32 %v495, %v541
        %v570 = vadd.f32 %v496, %v548
        %v571 = vadd.f32 %v497, %v555
        %580 = vset.pattern.permute.xlu0 0
        %581 = vperm.xlu0 %580, %v564
        %v582 = vpop.permute.xlu0 %581
        %583 = vset.pattern.permute.xlu0 0
        %584 = vperm.xlu0 %583, %v565
        %v585 = vpop.permute.xlu0 %584
        %586 = vset.pattern.permute.xlu0 0
        %587 = vperm.xlu0 %586, %v566
        %v588 = vpop.permute.xlu0 %587
        %589 = vset.pattern.permute.xlu0 0
        %590 = vperm.xlu0 %589, %v567
        %v591 = vpop.permute.xlu0 %590
        %592 = vset.pattern.permute.xlu0 0
        %593 = vperm.xlu0 %592, %v568
        %v594 = vpop.permute.xlu0 %593
        %595 = vset.pattern.permute.xlu0 0
        %596 = vperm.xlu0 %595, %v569
        %v597 = vpop.permute.xlu0 %596
        %598 = vset.pattern.permute.xlu0 0
        %599 = vperm.xlu0 %598, %v570
        %v600 = vpop.permute.xlu0 %599
        %601 = vset.pattern.permute.xlu0 0
        %602 = vperm.xlu0 %601, %v571
        %v603 = vpop.permute.xlu0 %602
        %v604 = vlaneseq
        %v605 = vand.u32 %v604, 127
        %v606 = vlaneseq
        %v607 = vshrl.u32 %v606, 7
        %v608 = vsub.s32 %v605, %v607
        %v609 = vrot.slane %v582, %v608
        %v610 = vlaneseq
        %v611 = vshrl.u32 %v610, 7
        %v612 = vsub.s32 %v605, %v611
        %v613 = vrot.slane %v585, %v612
        %v614 = vlaneseq
        %v615 = vshrl.u32 %v614, 7
        %v616 = vsub.s32 %v605, %v615
        %v617 = vrot.slane %v588, %v616
        %v618 = vlaneseq
        %v619 = vshrl.u32 %v618, 7
        %v620 = vsub.s32 %v605, %v619
        %v621 = vrot.slane %v591, %v620
        %v622 = vlaneseq
        %v623 = vshrl.u32 %v622, 7
        %v624 = vsub.s32 %v605, %v623
        %v625 = vrot.slane %v594, %v624
        %v626 = vlaneseq
        %v627 = vshrl.u32 %v626, 7
        %v628 = vsub.s32 %v605, %v627
        %v629 = vrot.slane %v597, %v628
        %v630 = vlaneseq
        %v631 = vshrl.u32 %v630, 7
        %v632 = vsub.s32 %v605, %v631
        %v633 = vrot.slane %v600, %v632
        %v634 = vlaneseq
        %v635 = vshrl.u32 %v634, 7
        %v636 = vsub.s32 %v605, %v635
        %v637 = vrot.slane %v603, %v636
        %vm638 = vcmask 1041409
        %v639 = vsel %vm638, %v613, %v609
        %vm640 = vcmask 1042434
        %v641 = vsel %vm640, %v617, %v639
        %vm642 = vcmask 1043459
        %v643 = vsel %vm642, %v621, %v641
        %vm644 = vcmask 1044484
        %v645 = vsel %vm644, %v625, %v643
        %vm646 = vcmask 1045509
        %v647 = vsel %vm646, %v629, %v645
        %vm648 = vcmask 1046534
        %v649 = vsel %vm648, %v633, %v647
        %vm650 = vcmask 1047559
        %v651 = vsel %vm650, %v637, %v649
        %vm653 = vcmask 64512
        %v654 = vsel %vm653, %v651, -inf
        %655 = vmax.xlane.f32.xlu0 %v654
        %v656 = vpop.xlane.xlu0 %655
        %v658 = vlaneseq
        %v659 = vshrl.u32 %v658, 7
        %v660 = vsub.s32 0, %v659
        %v661 = vrot.slane %v656, %v660
        %v662 = vlaneseq
        %v663 = vshrl.u32 %v662, 7
        %v664 = vsub.s32 1, %v663
        %v665 = vrot.slane %v656, %v664
        %v666 = vlaneseq
        %v667 = vshrl.u32 %v666, 7
        %v668 = vsub.s32 2, %v667
        %v669 = vrot.slane %v656, %v668
        %v670 = vlaneseq
        %v671 = vshrl.u32 %v670, 7
        %v672 = vsub.s32 3, %v671
        %v673 = vrot.slane %v656, %v672
        %v674 = vlaneseq
        %v675 = vshrl.u32 %v674, 7
        %v676 = vsub.s32 4, %v675
        %v677 = vrot.slane %v656, %v676
        %v678 = vlaneseq
        %v679 = vshrl.u32 %v678, 7
        %v680 = vsub.s32 5, %v679
        %v681 = vrot.slane %v656, %v680
        %v682 = vlaneseq
        %v683 = vshrl.u32 %v682, 7
        %v684 = vsub.s32 6, %v683
        %v685 = vrot.slane %v656, %v684
        %v686 = vlaneseq
        %v687 = vshrl.u32 %v686, 7
        %v688 = vsub.s32 7, %v687
        %v689 = vrot.slane %v656, %v688
        %v698 = vsub.f32 %v564, %v661
        %v699 = vsub.f32 %v565, %v665
        %v700 = vsub.f32 %v566, %v669
        %v701 = vsub.f32 %v567, %v673
        %v702 = vsub.f32 %v568, %v677
        %v703 = vsub.f32 %v569, %v681
        %v704 = vsub.f32 %v570, %v685
        %v705 = vsub.f32 %v571, %v689
        %v706 = vmul.f32 %v698, 1.442695
        %v707 = vpow.pop %v706
        %v708 = vmul.f32 %v699, 1.442695
        %v709 = vpow.pop %v708
        %v710 = vmul.f32 %v700, 1.442695
        %v711 = vpow.pop %v710
        %v712 = vmul.f32 %v701, 1.442695
        %v713 = vpow.pop %v712
        %v714 = vmul.f32 %v702, 1.442695
        %v715 = vpow.pop %v714
        %v716 = vmul.f32 %v703, 1.442695
        %v717 = vpow.pop %v716
        %v718 = vmul.f32 %v704, 1.442695
        %v719 = vpow.pop %v718
        %v720 = vmul.f32 %v705, 1.442695
        %v721 = vpow.pop %v720
        %730 = vset.pattern.permute.xlu0 0
        %731 = vperm.xlu0 %730, %v707
        %v732 = vpop.permute.xlu0 %731
        %733 = vset.pattern.permute.xlu0 0
        %734 = vperm.xlu0 %733, %v709
        %v735 = vpop.permute.xlu0 %734
        %736 = vset.pattern.permute.xlu0 0
        %737 = vperm.xlu0 %736, %v711
        %v738 = vpop.permute.xlu0 %737
        %739 = vset.pattern.permute.xlu0 0
        %740 = vperm.xlu0 %739, %v713
        %v741 = vpop.permute.xlu0 %740
        %742 = vset.pattern.permute.xlu0 0
        %743 = vperm.xlu0 %742, %v715
        %v744 = vpop.permute.xlu0 %743
        %745 = vset.pattern.permute.xlu0 0
        %746 = vperm.xlu0 %745, %v717
        %v747 = vpop.permute.xlu0 %746
        %748 = vset.pattern.permute.xlu0 0
        %749 = vperm.xlu0 %748, %v719
        %v750 = vpop.permute.xlu0 %749
        %751 = vset.pattern.permute.xlu0 0
        %752 = vperm.xlu0 %751, %v721
        %v753 = vpop.permute.xlu0 %752
        %v754 = vlaneseq
        %v755 = vshrl.u32 %v754, 7
        %v756 = vsub.s32 %v605, %v755
        %v757 = vrot.slane %v732, %v756
        %v758 = vlaneseq
        %v759 = vshrl.u32 %v758, 7
        %v760 = vsub.s32 %v605, %v759
        %v761 = vrot.slane %v735, %v760
        %v762 = vlaneseq
        %v763 = vshrl.u32 %v762, 7
        %v764 = vsub.s32 %v605, %v763
        %v765 = vrot.slane %v738, %v764
        %v766 = vlaneseq
        %v767 = vshrl.u32 %v766, 7
        %v768 = vsub.s32 %v605, %v767
        %v769 = vrot.slane %v741, %v768
        %v770 = vlaneseq
        %v771 = vshrl.u32 %v770, 7
        %v772 = vsub.s32 %v605, %v771
        %v773 = vrot.slane %v744, %v772
        %v774 = vlaneseq
        %v775 = vshrl.u32 %v774, 7
        %v776 = vsub.s32 %v605, %v775
        %v777 = vrot.slane %v747, %v776
        %v778 = vlaneseq
        %v779 = vshrl.u32 %v778, 7
        %v780 = vsub.s32 %v605, %v779
        %v781 = vrot.slane %v750, %v780
        %v782 = vlaneseq
        %v783 = vshrl.u32 %v782, 7
        %v784 = vsub.s32 %v605, %v783
        %v785 = vrot.slane %v753, %v784
        %v786 = vsel %vm638, %v761, %v757
        %v787 = vsel %vm640, %v765, %v786
        %v788 = vsel %vm642, %v769, %v787
        %v789 = vsel %vm644, %v773, %v788
        %v790 = vsel %vm646, %v777, %v789
        %v791 = vsel %vm648, %v781, %v790
        %v792 = vsel %vm650, %v785, %v791
        %v794 = vsel %vm653, %v792, 0.0
        %795 = vadd.xlane.f32.xlu0 %v794
        %v796 = vpop.xlane.xlu0 %795
        %v797 = vrcp.pop %v796
        %v799 = vlaneseq
        %v800 = vshrl.u32 %v799, 7
        %v801 = vsub.s32 0, %v800
        %v802 = vrot.slane %v797, %v801
        %v803 = vlaneseq
        %v804 = vshrl.u32 %v803, 7
        %v805 = vsub.s32 1, %v804
        %v806 = vrot.slane %v797, %v805
        %v807 = vlaneseq
        %v808 = vshrl.u32 %v807, 7
        %v809 = vsub.s32 2, %v808
        %v810 = vrot.slane %v797, %v809
        %v811 = vlaneseq
        %v812 = vshrl.u32 %v811, 7
        %v813 = vsub.s32 3, %v812
        %v814 = vrot.slane %v797, %v813
        %v815 = vlaneseq
        %v816 = vshrl.u32 %v815, 7
        %v817 = vsub.s32 4, %v816
        %v818 = vrot.slane %v797, %v817
        %v819 = vlaneseq
        %v820 = vshrl.u32 %v819, 7
        %v821 = vsub.s32 5, %v820
        %v822 = vrot.slane %v797, %v821
        %v823 = vlaneseq
        %v824 = vshrl.u32 %v823, 7
        %v825 = vsub.s32 6, %v824
        %v826 = vrot.slane %v797, %v825
        %v827 = vlaneseq
        %v828 = vshrl.u32 %v827, 7
        %v829 = vsub.s32 7, %v828
        %v830 = vrot.slane %v797, %v829
        %v839 = vmul.f32 %v707, %v802
        %v840 = vmul.f32 %v709, %v806
        %v841 = vmul.f32 %v711, %v810
        %v842 = vmul.f32 %v713, %v814
        %v843 = vmul.f32 %v715, %v818
        %v844 = vmul.f32 %v717, %v822
        %v845 = vmul.f32 %v719, %v826
        %v846 = vmul.f32 %v721, %v830
        %855 = vset.pattern.permute.xlu0 0
        %856 = vperm.xlu0 %855, %v839
        %v857 = vpop.permute.xlu0 %856
        %858 = vset.pattern.permute.xlu0 0
        %859 = vperm.xlu0 %858, %v840
        %v860 = vpop.permute.xlu0 %859
        %861 = vset.pattern.permute.xlu0 0
        %862 = vperm.xlu0 %861, %v841
        %v863 = vpop.permute.xlu0 %862
        %864 = vset.pattern.permute.xlu0 0
        %865 = vperm.xlu0 %864, %v842
        %v866 = vpop.permute.xlu0 %865
        %867 = vset.pattern.permute.xlu0 0
        %868 = vperm.xlu0 %867, %v843
        %v869 = vpop.permute.xlu0 %868
        %870 = vset.pattern.permute.xlu0 0
        %871 = vperm.xlu0 %870, %v844
        %v872 = vpop.permute.xlu0 %871
        %873 = vset.pattern.permute.xlu0 0
        %874 = vperm.xlu0 %873, %v845
        %v875 = vpop.permute.xlu0 %874
        %876 = vset.pattern.permute.xlu0 0
        %877 = vperm.xlu0 %876, %v846
        %v878 = vpop.permute.xlu0 %877
        %v879 = vlaneseq
        %v880 = vshrl.u32 %v879, 7
        %v881 = vsub.s32 %v605, %v880
        %v882 = vrot.slane %v857, %v881
        %v883 = vlaneseq
        %v884 = vshrl.u32 %v883, 7
        %v885 = vsub.s32 %v605, %v884
        %v886 = vrot.slane %v860, %v885
        %v887 = vlaneseq
        %v888 = vshrl.u32 %v887, 7
        %v889 = vsub.s32 %v605, %v888
        %v890 = vrot.slane %v863, %v889
        %v891 = vlaneseq
        %v892 = vshrl.u32 %v891, 7
        %v893 = vsub.s32 %v605, %v892
        %v894 = vrot.slane %v866, %v893
        %v895 = vlaneseq
        %v896 = vshrl.u32 %v895, 7
        %v897 = vsub.s32 %v605, %v896
        %v898 = vrot.slane %v869, %v897
        %v899 = vlaneseq
        %v900 = vshrl.u32 %v899, 7
        %v901 = vsub.s32 %v605, %v900
        %v902 = vrot.slane %v872, %v901
        %v903 = vlaneseq
        %v904 = vshrl.u32 %v903, 7
        %v905 = vsub.s32 %v605, %v904
        %v906 = vrot.slane %v875, %v905
        %v907 = vlaneseq
        %v908 = vshrl.u32 %v907, 7
        %v909 = vsub.s32 %v605, %v908
        %v910 = vrot.slane %v878, %v909
        %v911 = vsel %vm638, %v886, %v882
        %v912 = vsel %vm640, %v890, %v911
        %v913 = vsel %vm642, %v894, %v912
        %v914 = vsel %vm644, %v898, %v913
        %v915 = vsel %vm646, %v902, %v914
        %v916 = vsel %vm648, %v906, %v915
        %v917 = vsel %vm650, %v910, %v916
        %919 = vst.msk [vmem:[%s326] sm:$0xff] %vm653, %v917
        %v928 = vmul.f32 %v328, %v857
        %v929 = vmul.f32 %v329, %v860
        %v930 = vmul.f32 %v330, %v863
        %v931 = vmul.f32 %v331, %v866
        %v932 = vmul.f32 %v332, %v869
        %v933 = vmul.f32 %v333, %v872
        %v934 = vmul.f32 %v334, %v875
        %v935 = vmul.f32 %v335, %v878
        %v936 = vsel %vm363, %v928, 0.0
        %v937 = vrot.slane %v936, 4
        %v938 = vadd.f32 %v936, %v937
        %v939 = vrot.slane %v938, 2
        %v940 = vadd.f32 %v938, %v939
        %v941 = vrot.slane %v940, 1
        %v942 = vadd.f32 %v940, %v941
        %v943 = vsel %vm363, %v929, 0.0
        %v944 = vrot.slane %v943, 4
        %v945 = vadd.f32 %v943, %v944
        %v946 = vrot.slane %v945, 2
        %v947 = vadd.f32 %v945, %v946
        %v948 = vrot.slane %v947, 1
        %v949 = vadd.f32 %v947, %v948
        %v950 = vsel %vm363, %v930, 0.0
        %v951 = vrot.slane %v950, 4
        %v952 = vadd.f32 %v950, %v951
        %v953 = vrot.slane %v952, 2
        %v954 = vadd.f32 %v952, %v953
        %v955 = vrot.slane %v954, 1
        %v956 = vadd.f32 %v954, %v955
        %v957 = vsel %vm363, %v931, 0.0
        %v958 = vrot.slane %v957, 4
        %v959 = vadd.f32 %v957, %v958
        %v960 = vrot.slane %v959, 2
        %v961 = vadd.f32 %v959, %v960
        %v962 = vrot.slane %v961, 1
        %v963 = vadd.f32 %v961, %v962
        %v964 = vsel %vm363, %v932, 0.0
        %v965 = vrot.slane %v964, 4
        %v966 = vadd.f32 %v964, %v965
        %v967 = vrot.slane %v966, 2
        %v968 = vadd.f32 %v966, %v967
        %v969 = vrot.slane %v968, 1
        %v970 = vadd.f32 %v968, %v969
        %v971 = vsel %vm363, %v933, 0.0
        %v972 = vrot.slane %v971, 4
        %v973 = vadd.f32 %v971, %v972
        %v974 = vrot.slane %v973, 2
        %v975 = vadd.f32 %v973, %v974
        %v976 = vrot.slane %v975, 1
        %v977 = vadd.f32 %v975, %v976
        %v978 = vsel %vm363, %v934, 0.0
        %v979 = vrot.slane %v978, 4
        %v980 = vadd.f32 %v978, %v979
        %v981 = vrot.slane %v980, 2
        %v982 = vadd.f32 %v980, %v981
        %v983 = vrot.slane %v982, 1
        %v984 = vadd.f32 %v982, %v983
        %v985 = vsel %vm363, %v935, 0.0
        %v986 = vrot.slane %v985, 4
        %v987 = vadd.f32 %v985, %v986
        %v988 = vrot.slane %v987, 2
        %v989 = vadd.f32 %v987, %v988
        %v990 = vrot.slane %v989, 1
        %v991 = vadd.f32 %v989, %v990
        %v1000 = vsel %vm638, %v949, %v942
        %v1001 = vsel %vm640, %v956, %v1000
        %v1002 = vsel %vm642, %v963, %v1001
        %v1003 = vsel %vm644, %v970, %v1002
        %v1004 = vsel %vm646, %v977, %v1003
        %v1005 = vsel %vm648, %v984, %v1004
        %v1006 = vsel %vm650, %v991, %v1005
        %1008 = vst.msk [vmem:[%s311] sm:$0xff] %vm363, %v1006
        %s1009 = sand.u32 %s170, 1
        %s1010 = scalar_lea.sflag [#allocation5], %s1009
        %s1011 = sand.u32 %s170, 1
        %s1012 = smul.addr %s1011, 8
        %s1013 = scalar_lea.vmem [#allocation6], %s1012
        %p1014 = scmp.lt.s32.totalorder %s26, 1
        %s1015 = scalar_select %p1014, %s26, 1
        %s1016 = smul.addr %s1015, 8
        %s1017 = scalar_lea.vmem %s7, %s1016
        // Predicated region
        $region49: #{tpu_custom_call.1} parent=43 // pred_check
          %p1018 = pneg %p180
        $region50: #{tpu_custom_call.1} parent=43 // pred_check_branch
          %1020 = sbr.rel (%p1018) target = $region52
        $region51: #{tpu_custom_call.1} parent=43 // pred_region
          %s1022 = ssub.s32 128, 128
          %1023 = vsyncadd %s1010, %s1022
          %s1024 = smul.addr %s26, 128
          %s1025 = scalar_lea.hbm %s6, %s1024
          %s1027 = sshll.u32 %s1013, 4
          %s1028 = int_to_ptr.vmem [resolvable:$true] %s1027
          %1030 = dma.vmem_to_hbm [thread:$0]  %s1028, 128, %s1025, %s1010
        $region52: #{tpu_custom_call.1} parent=43 // pred_fallthru
          _
        // Predicated region
        $region53: #{tpu_custom_call.1} parent=43 // pred_check
          %p1031 = pneg %p206
        $region54: #{tpu_custom_call.1} parent=43 // pred_check_branch
          %1033 = sbr.rel (%p1031) target = $region56
        $region55: #{tpu_custom_call.1} parent=43 // pred_region
          _
        $region56: #{tpu_custom_call.1} parent=43 // pred_fallthru
          _
      $region44: #{tpu_custom_call.1} parent=5 // pred_fallthru
        _
      %p1034 = scmp.le.s32.totalorder 2, %s21
      // Predicated region
      $region57: #{tpu_custom_call.1} parent=5 // pred_check
        %p1035 = pneg %p1034
      $region58: #{tpu_custom_call.1} parent=5 // pred_check_branch
        %1037 = sbr.rel (%p1035) target = $region60
      $region59: #{tpu_custom_call.1} parent=5 // pred_region
        %s1038 = ssub.s32 %s21, 2
        // Predicated region
        $region61: #{tpu_custom_call.1} parent=59 // pred_check
          %p1039 = pneg %p186
        $region62: #{tpu_custom_call.1} parent=59 // pred_check_branch
          %1041 = sbr.rel (%p1039) target = $region64
        $region63: #{tpu_custom_call.1} parent=59 // pred_region
          %s1042 = sand.u32 %s171, 1
          %s1043 = scalar_lea.sflag [#allocation5], %s1042
          %s1044 = sand.u32 %s171, 1
          %s1045 = smul.addr %s1044, 8
          %s1046 = scalar_lea.vmem [#allocation6], %s1045
          %1047 = dma.done %s1043, 128
        $region64: #{tpu_custom_call.1} parent=59 // pred_fallthru
          _
        // Predicated region
        $region65: #{tpu_custom_call.1} parent=59 // pred_check
          %p1048 = pneg %p212
        $region66: #{tpu_custom_call.1} parent=59 // pred_check_branch
          %1050 = sbr.rel (%p1048) target = $region68
        $region67: #{tpu_custom_call.1} parent=59 // pred_region
          %p1051 = scmp.lt.s32.totalorder %s27, 1
          %s1052 = scalar_select %p1051, %s27, 1
          %s1053 = smul.addr %s1052, 8
          %s1054 = scalar_lea.vmem %s7, %s1053
        $region68: #{tpu_custom_call.1} parent=59 // pred_fallthru
          _
      $region60: #{tpu_custom_call.1} parent=5 // pred_fallthru
        _
    $region6: #{tpu_custom_call.1} parent=1 // loop_footer
      %s25 = sadd.s32 1, %s21
    $region7: #{tpu_custom_call.1} parent=1 // loop_footer_branch
      %20 = sbr.rel target = $region3
    $region8: #{tpu_custom_call.1} parent=1 // loop_exit
      _
    %1055 = vsyncpa [#allocation4], 1
    %s1056 = scalar_lea.sflag [#allocation4], 1
    %1057 = vsyncpa %s1056, 1
    %1058 = vsyncpa [#allocation5], 1
    %s1059 = scalar_lea.sflag [#allocation5], 1
    %1060 = vsyncpa %s1059, 1

</llo_original>
